<compile_context>
chip_gen: v6e
topology: v6e:2x2x1
jax: 0.10.0
libtpu: 0.0.40
codegen_flags: <defaults>
</compile_context>

<pallas_src>
import functools

import jax
import jax.numpy as jnp
from jax import lax
from jax.experimental import pallas as pl
from jax.experimental.pallas import tpu as pltpu

IGNORE_INDEX = 255
SMOOTH_FACTOR = 0.05   # SoftCrossEntropyLoss smooth_factor
DICE_SMOOTH = 0.05     # DiceLoss smooth
DICE_EPS = 1e-7        # DiceLoss eps (clamp_min on denominator)
AUX_WEIGHT = 0.4


# --------------------------- kernel helpers ---------------------------

def _fold_lanes(a, fold):
    """(R, T) -> (R, fold): sum of consecutive `fold`-wide lane groups.
    Static slices at 128-lane boundaries select whole vreg columns (no relayout)."""
    T = a.shape[-1]
    if T == fold:
        return a
    acc = a[:, 0:fold]
    for j in range(1, T // fold):
        acc = acc + a[:, j * fold:(j + 1) * fold]
    return acc


def _softce_terms(x, onehot, valid, num_classes):
    """Soft-CE pieces for one head.  x: (C, TP) logits in their native dtype.
    Returns lane-wise nll / smooth rows (1, TP) plus exp(z) and its class-sum
    (reused for the dice probabilities)."""
    m = jnp.max(x, axis=0, keepdims=True)                       # native dtype (exact)
    z = x.astype(jnp.float32) - m.astype(jnp.float32)           # (C, TP) f32
    e = jnp.exp(z)                                              # (C, TP)
    s = jnp.sum(e, axis=0, keepdims=True)                       # (1, TP)
    lse = jnp.log(s)                                            # (1, TP)
    # -logp[label]  = lse - z[label]
    nll = (lse - jnp.sum(z * onehot, axis=0, keepdims=True)) * valid
    # -sum_c logp_c = C*lse - sum_c z_c
    sm = (num_classes * lse - jnp.sum(z, axis=0, keepdims=True)) * valid
    return nll, sm, e, s


def _loss_kernel(*refs, heads, hw, tile_p, fold, num_classes):
    if heads == 2:
        main_ref, aux_ref, lab_ref, ce_ref, inter_ref, psum_ref, tsum_ref = refs
    else:
        main_ref, lab_ref, ce_ref, inter_ref, psum_ref, tsum_ref = refs
        aux_ref = None

    g = pl.program_id(1)
    i = pl.program_id(2)
    t_inner = pl.num_programs(2)
    global_tile = g * t_inner + i

    @pl.when(i == 0)
    def _():
        ce_ref[...] = jnp.zeros_like(ce_ref)
        inter_ref[...] = jnp.zeros_like(inter_ref)
        psum_ref[...] = jnp.zeros_like(psum_ref)
        tsum_ref[...] = jnp.zeros_like(tsum_ref)

    def accum(mask_tail):
        labels = lab_ref[...].astype(jnp.int32)                 # (1, TP)
        xs = [main_ref[...]] + ([aux_ref[...]] if heads == 2 else [])

        if mask_tail:   # only traced for the ragged last tile
            pix = global_tile * tile_p + lax.broadcasted_iota(jnp.int32, (1, tile_p), 1)
            inb = pix < hw
            labels = jnp.where(inb, labels, IGNORE_INDEX)
            xs = [jnp.where(inb, x, jnp.zeros_like(x)) for x in xs]

        valid = (labels != IGNORE_INDEX).astype(jnp.float32)    # (1, TP)
        class_iota = lax.broadcasted_iota(jnp.int32, (num_classes, tile_p), 0)
        # one-hot is all-zero at ignored pixels (255 >= C)
        onehot = (class_iota == labels).astype(jnp.float32)     # (C, TP)

        e_main = s_main = None
        for h, x in enumerate(xs):
            nll, sm, e, s = _softce_terms(x, onehot, valid, num_classes)
            ce_ref[2 * h:2 * h + 1, :] += _fold_lanes(nll, fold)
            ce_ref[2 * h + 1:2 * h + 2, :] += _fold_lanes(sm, fold)
            if h == 0:
                e_main, s_main = e, s

        # Dice pieces (main head only): prob = softmax = e * (1/s); recip on the EUP
        prob = e_main * pl.reciprocal(s_main, approx=True)      # (C, TP)
        inter_ref[...] += _fold_lanes(prob * onehot, fold)      # onehot already masks ignore
        psum_ref[...] += _fold_lanes(prob * valid, fold)
        tsum_ref[...] += _fold_lanes(onehot, fold)

    if (hw % tile_p) != 0:
        # ragged case: gate the masking work to the single tail tile
        last = pl.num_programs(1) * t_inner - 1

        @pl.when(global_tile != last)
        def _():
            accum(False)

        @pl.when(global_tile == last)
        def _():
            accum(True)
    else:
        accum(False)


# --------------------------- pallas_call wrapper ---------------------------

@functools.partial(
    jax.jit,
    static_argnames=("heads", "num_classes", "tile_p", "hw", "groups", "vmem_limit"))
def _run(main3, aux3, lab3, *, heads, num_classes, tile_p, hw, groups, vmem_limit):
    R = main3.shape[0]
    C = num_classes
    fold = 128 if tile_p % 128 == 0 else tile_p
    n_tiles = pl.cdiv(hw, tile_p)
    t_inner = n_tiles // groups          # groups chosen so this divides exactly

    kernel = functools.partial(_loss_kernel, heads=heads, hw=hw, tile_p=tile_p,
                               fold=fold, num_classes=C)

    logit_spec = pl.BlockSpec((None, C, tile_p), lambda n, g, i: (n, 0, g * t_inner + i))
    lab_spec = pl.BlockSpec((None, 1, tile_p), lambda n, g, i: (n, 0, g * t_inner + i))

    def acc_spec(rows):
        return pl.BlockSpec((None, None, rows, fold), lambda n, g, i: (n, g, 0, 0))

    inputs = (main3, lab3) if heads == 1 else (main3, aux3, lab3)
    in_specs = [logit_spec] * heads + [lab_spec]

    per_class = jax.ShapeDtypeStruct((R, groups, C, fold), jnp.float32)
    out_shape = (jax.ShapeDtypeStruct((R, groups, 2 * heads, fold), jnp.float32),
                 per_class, per_class, per_class)
    out_specs = [acc_spec(2 * heads), acc_spec(C), acc_spec(C), acc_spec(C)]

    return pl.pallas_call(
        kernel,
        out_shape=out_shape,
        grid_spec=pltpu.PrefetchScalarGridSpec(
            num_scalar_prefetch=0,
            grid=(R, groups, t_inner),
            in_specs=in_specs,
            out_specs=out_specs,
        ),
        compiler_params=pltpu.CompilerParams(
            dimension_semantics=("parallel", "parallel", "arbitrary"),
            vmem_limit_bytes=vmem_limit),
    )(*inputs)


# --------------------------- sizing helpers ---------------------------

@functools.lru_cache(maxsize=1)
def _vmem_params():
    """(budget_bytes, vmem_limit_bytes) derived from the chip's VMEM capacity."""
    try:
        cap = int(pltpu.get_tpu_info().vmem_capacity_bytes)
    except Exception:
        cap = 64 << 20                       # conservative (v7x-sized) fallback
    budget = min(cap // 3, 40 << 20)         # ~40 MiB on v5e/v6e, ~21 MiB on v7x
    limit = min((cap * 3) // 4, 96 << 20)    # scoped-VMEM limit handed to Mosaic
    return budget, limit


def _pick_tile(hw, num_classes, heads, logit_itemsize, max_tile, budget):
    """Largest pixel tile (multiple of 128, or the full row) that fits the budget:
    double-buffered logit/label blocks plus estimated in-kernel f32 temporaries.
    Accumulators are lane-folded to width 128 so they no longer scale with the tile."""
    live_tmp = 4 + 4 * heads                             # live (C, tile) f32 temporaries
    per_col = (2 * heads * num_classes * logit_itemsize  # logits, double-buffered
               + 2 * 4                                   # labels (worst case int32), x2
               + live_tmp * num_classes * 4)
    t = max(128, budget // max(per_col, 1))
    t = min(t, max_tile)
    if hw <= t:
        return hw                  # single full-row block: any width equal to the dim is legal
    return max(128, (t // 128) * 128)


def _choose_groups(batch_rows, n_tiles):
    """Split the pixel-tile range across a second parallel axis when the batch alone
    cannot feed two TensorCores (v7x).  No-op unless the split is exact."""
    if batch_rows >= 2 or n_tiles < 2 or (n_tiles % 2) != 0:
        return 1
    return 2


# --------------------------- public loss ---------------------------

def unetformer_loss(logits, labels, training=True, max_tile=16384):
    """JAX/Pallas port of UnetFormerLoss.forward.
    `logits` is either a single NCHW array or a tuple (logit_main, logit_aux)."""
    if training and isinstance(logits, (tuple, list)) and len(logits) == 2:
        logit_main, logit_aux = logits
        use_aux = True
    else:
        logit_main = logits[0] if isinstance(logits, (tuple, list)) else logits
        logit_aux = None
        use_aux = False

    N, C, H, W = logit_main.shape
    assert C < IGNORE_INDEX, "one-hot-via-compare requires num_classes < ignore_index"
    HW = H * W

    main3 = logit_main.reshape(N, C, HW)                  # free reshape, keeps dtype/layout
    aux3 = logit_aux.reshape(N, C, HW) if use_aux else None
    lab3 = labels.reshape(N, 1, HW)
    if (not jnp.issubdtype(lab3.dtype, jnp.integer)) or jnp.dtype(lab3.dtype).itemsize > 4:
        lab3 = lab3.astype(jnp.int32)                     # narrow int labels stream as-is

    heads = 2 if use_aux else 1
    budget, vmem_limit = _vmem_params()
    tile_p = _pick_tile(HW, C, heads, jnp.dtype(logit_main.dtype).itemsize, max_tile, budget)
    n_tiles = pl.cdiv(HW, tile_p)
    groups = _choose_groups(N, n_tiles)

    ce, inter, psum, tsum = _run(main3, aux3, lab3, heads=heads, num_classes=C,
                                 tile_p=tile_p, hw=HW, groups=groups, vmem_limit=vmem_limit)

    # tiny final reductions over batch rows, tile groups and lanes (plain JAX)
    ce = jnp.sum(ce, axis=(0, 1, 3))        # (2*heads,) : nll_m, sm_m[, nll_a, sm_a]
    inter = jnp.sum(inter, axis=(0, 1, 3))  # (C,)
    psum = jnp.sum(psum, axis=(0, 1, 3))
    tsum = jnp.sum(tsum, axis=(0, 1, 3))

    # SoftCE mean over ALL pixels (ignored contribute 0), matching pytorch_toolbelt's
    # masked-fill-then-mean behavior used by UnetFormerLoss.
    denom = jnp.float32(N * HW)
    eps = SMOOTH_FACTOR
    ce_main = (1.0 - eps) * (ce[0] / denom) + (eps / C) * (ce[1] / denom)

    cardinality = psum + tsum
    scores = (2.0 * inter + DICE_SMOOTH) / jnp.maximum(cardinality + DICE_SMOOTH, DICE_EPS)
    dice_loss = jnp.mean((1.0 - scores) * (tsum > 0).astype(jnp.float32))

    loss = ce_main + dice_loss              # JointLoss weights (1.0, 1.0)
    if use_aux:
        ce_aux = (1.0 - eps) * (ce[2] / denom) + (eps / C) * (ce[3] / denom)
        loss = loss + AUX_WEIGHT * ce_aux
    return loss


# -------------------- pure-JAX reference (numerical sanity check) --------------------

def _ref_softce(logits, labels):
    C = logits.shape[1]
    lp = jax.nn.log_softmax(logits, axis=1)
    valid = labels != IGNORE_INDEX
    tgt = jnp.where(valid, labels, 0)
    nll = -jnp.take_along_axis(lp, tgt[:, None], axis=1)[:, 0]
    sm = -jnp.sum(lp, axis=1)
    nll = jnp.where(valid, nll, 0.0)
    sm = jnp.where(valid, sm, 0.0)
    return (1.0 - SMOOTH_FACTOR) * nll.mean() + (SMOOTH_FACTOR / C) * sm.mean()


def _ref_dice(logits, labels):
    N, C, H, W = logits.shape
    prob = jax.nn.softmax(logits, axis=1).reshape(N, C, -1)
    y = labels.reshape(N, -1)
    mask = (y != IGNORE_INDEX)
    prob = prob * mask[:, None, :]
    onehot = jax.nn.one_hot(jnp.where(mask, y, 0), C).transpose(0, 2, 1) * mask[:, None, :]
    dims = (0, 2)
    inter = jnp.sum(prob * onehot, dims)
    card = jnp.sum(prob + onehot, dims)
    scores = (2.0 * inter + DICE_SMOOTH) / jnp.maximum(card + DICE_SMOOTH, DICE_EPS)
    return jnp.mean((1.0 - scores) * (jnp.sum(onehot, dims) > 0))


def _ref_loss(logits, labels, training=True):
    if training and isinstance(logits, (tuple, list)) and len(logits) == 2:
        lm, la = logits
        lm = lm.astype(jnp.float32)
        la = la.astype(jnp.float32)
        return _ref_softce(lm, labels) + _ref_dice(lm, labels) + AUX_WEIGHT * _ref_softce(la, labels)
    lm = (logits[0] if isinstance(logits, (tuple, list)) else logits).astype(jnp.float32)
    return _ref_softce(lm, labels) + _ref_dice(lm, labels)


if __name__ == "__main__":
    key = jax.random.PRNGKey(0)
    k1, k2, k3, k4, k5 = jax.random.split(key, 5)
    # approx EUP reciprocal + bf16 inputs -> use a slightly relaxed (but still tight) tolerance
    RTOL, ATOL = 1e-3, 1e-3

    # --- case 1: training path (dual head), f32, single full-row tile ---
    N, C, H, W = 2, 4, 16, 16
    lm = jax.random.normal(k1, (N, C, H, W), dtype=jnp.float32)
    la = jax.random.normal(k2, (N, C, H, W), dtype=jnp.float32)
    lab = jax.random.randint(k3, (N, H, W), 0, C, dtype=jnp.int32)
    lab = jnp.where(jax.random.bernoulli(k4, 0.1, (N, H, W)), IGNORE_INDEX, lab)

    loss = jax.block_until_ready(unetformer_loss((lm, la), lab, training=True))
    ref = jax.block_until_ready(_ref_loss((lm, la), lab, training=True))
    assert jnp.allclose(loss, ref, rtol=RTOL, atol=ATOL), (loss, ref)

    # --- case 2: eval / single-head path (JointLoss only) ---
    loss_e = jax.block_until_ready(unetformer_loss(lm, lab, training=False))
    ref_e = jax.block_until_ready(_ref_loss(lm, lab, training=False))
    assert jnp.allclose(loss_e, ref_e, rtol=RTOL, atol=ATOL), (loss_e, ref_e)

    # --- case 3: bf16 logits + ragged pixel tiling (HW=330, tile_p=128 -> gated masked tail) ---
    N2, C2, H2, W2 = 1, 5, 10, 33
    lm2 = jax.random.normal(k5, (N2, C2, H2, W2), dtype=jnp.float32)
    la2 = lm2[:, ::-1] * 0.5
    lab2 = jax.random.randint(k3, (N2, H2, W2), 0, C2, dtype=jnp.int32)
    lab2 = jnp.where(jax.random.bernoulli(k4, 0.15, (N2, H2, W2)), IGNORE_INDEX, lab2)
    lm2b = lm2.astype(jnp.bfloat16)
    la2b = la2.astype(jnp.bfloat16)

    loss2 = jax.block_until_ready(
        unetformer_loss((lm2b, la2b), lab2, training=True, max_tile=128))
    ref2 = jax.block_until_ready(_ref_loss((lm2b, la2b), lab2, training=True))
    assert jnp.allclose(loss2, ref2, rtol=RTOL, atol=ATOL), (loss2, ref2)

    # --- case 4: N=1 with 2 parallel pixel-tile groups (v7x path) + ragged tail ---
    N3, C3, H3, W3 = 1, 6, 25, 40          # HW=1000, tile=256 -> 4 tiles, groups=2
    lm3 = jax.random.normal(k2, (N3, C3, H3, W3), dtype=jnp.float32)
    la3 = jax.random.normal(k1, (N3, C3, H3, W3), dtype=jnp.float32)
    lab3 = jax.random.randint(k5, (N3, H3, W3), 0, C3, dtype=jnp.int32)
    lab3 = jnp.where(jax.random.bernoulli(k4, 0.1, (N3, H3, W3)), IGNORE_INDEX, lab3)

    loss3 = jax.block_until_ready(
        unetformer_loss((lm3, la3), lab3, training=True, max_tile=256))
    ref3 = jax.block_until_ready(_ref_loss((lm3, la3), lab3, training=True))
    assert jnp.allclose(loss3, ref3, rtol=RTOL, atol=ATOL), (loss3, ref3)

    print("KERNEL_OK")
</pallas_src>

<mosaic_0001>
module attributes {stable_mosaic.version = 11 : i64} {
  func.func @_loss_kernel(%arg0: i32, %arg1: i32, %arg2: i32, %arg3: memref<1x4x256xf32, #tpu.memory_space<vmem>>, %arg4: memref<1x4x256xf32, #tpu.memory_space<vmem>>, %arg5: memref<1x1x256xi32, #tpu.memory_space<vmem>>, %arg6: memref<1x1x4x128xf32, #tpu.memory_space<vmem>>, %arg7: memref<1x1x4x128xf32, #tpu.memory_space<vmem>>, %arg8: memref<1x1x4x128xf32, #tpu.memory_space<vmem>>, %arg9: memref<1x1x4x128xf32, #tpu.memory_space<vmem>>) attributes {dimension_semantics = [#tpu.dimension_semantics<parallel>, #tpu.dimension_semantics<parallel>, #tpu.dimension_semantics<arbitrary>], iteration_bounds = array<i64: 2, 1, 1>, scalar_prefetch = 0 : i64, scratch_operands = 0 : i64, tpu.core_type = #tpu.core_type<tc>, window_params = [{transform_indices = @transform_0, window_bounds = array<i64: 1, 4, 256>}, {transform_indices = @transform_1, window_bounds = array<i64: 1, 4, 256>}, {transform_indices = @transform_2, window_bounds = array<i64: 1, 1, 256>}, {transform_indices = @transform_3, window_bounds = array<i64: 1, 1, 4, 128>}, {transform_indices = @transform_4, window_bounds = array<i64: 1, 1, 4, 128>}, {transform_indices = @transform_5, window_bounds = array<i64: 1, 1, 4, 128>}, {transform_indices = @transform_6, window_bounds = array<i64: 1, 1, 4, 128>}]} {
    %c0_i32 = arith.constant 0 : i32
    %0 = arith.cmpi eq, %arg2, %c0_i32 : i32
    %1 = arith.extui %0 : i1 to i32
    %c0_i32_0 = arith.constant 0 : i32
    %2 = arith.cmpi ne, %1, %c0_i32_0 : i32
    scf.if %2 {
      %cst_71 = arith.constant 0.000000e+00 : f32
      %125 = vector.broadcast %cst_71 : f32 to vector<4x128xf32>
      %c0_72 = arith.constant 0 : index
      %c0_73 = arith.constant 0 : index
      %c0_74 = arith.constant 0 : index
      %c0_75 = arith.constant 0 : index
      %126 = vector.load %arg6[%c0_72, %c0_73, %c0_74, %c0_75] : memref<1x1x4x128xf32, #tpu.memory_space<vmem>>, vector<1x1x4x128xf32>
      %127 = vector.shape_cast %126 : vector<1x1x4x128xf32> to vector<4x128xf32>
      %128 = vector.shape_cast %125 : vector<4x128xf32> to vector<1x1x4x128xf32>
      tpu.vector_store %arg6[%c0_72, %c0_73, %c0_74, %c0_75], %128 {strides = array<i32>} : memref<1x1x4x128xf32, #tpu.memory_space<vmem>>, vector<1x1x4x128xf32>,
      %cst_76 = arith.constant 0.000000e+00 : f32
      %129 = vector.broadcast %cst_76 : f32 to vector<4x128xf32>
      %c0_77 = arith.constant 0 : index
      %c0_78 = arith.constant 0 : index
      %c0_79 = arith.constant 0 : index
      %c0_80 = arith.constant 0 : index
      %130 = vector.load %arg7[%c0_77, %c0_78, %c0_79, %c0_80] : memref<1x1x4x128xf32, #tpu.memory_space<vmem>>, vector<1x1x4x128xf32>
      %131 = vector.shape_cast %130 : vector<1x1x4x128xf32> to vector<4x128xf32>
      %132 = vector.shape_cast %129 : vector<4x128xf32> to vector<1x1x4x128xf32>
      tpu.vector_store %arg7[%c0_77, %c0_78, %c0_79, %c0_80], %132 {strides = array<i32>} : memref<1x1x4x128xf32, #tpu.memory_space<vmem>>, vector<1x1x4x128xf32>,
      %cst_81 = arith.constant 0.000000e+00 : f32
      %133 = vector.broadcast %cst_81 : f32 to vector<4x128xf32>
      %c0_82 = arith.constant 0 : index
      %c0_83 = arith.constant 0 : index
      %c0_84 = arith.constant 0 : index
      %c0_85 = arith.constant 0 : index
      %134 = vector.load %arg8[%c0_82, %c0_83, %c0_84, %c0_85] : memref<1x1x4x128xf32, #tpu.memory_space<vmem>>, vector<1x1x4x128xf32>
      %135 = vector.shape_cast %134 : vector<1x1x4x128xf32> to vector<4x128xf32>
      %136 = vector.shape_cast %133 : vector<4x128xf32> to vector<1x1x4x128xf32>
      tpu.vector_store %arg8[%c0_82, %c0_83, %c0_84, %c0_85], %136 {strides = array<i32>} : memref<1x1x4x128xf32, #tpu.memory_space<vmem>>, vector<1x1x4x128xf32>,
      %cst_86 = arith.constant 0.000000e+00 : f32
      %137 = vector.broadcast %cst_86 : f32 to vector<4x128xf32>
      %c0_87 = arith.constant 0 : index
      %c0_88 = arith.constant 0 : index
      %c0_89 = arith.constant 0 : index
      %c0_90 = arith.constant 0 : index
      %138 = vector.load %arg9[%c0_87, %c0_88, %c0_89, %c0_90] : memref<1x1x4x128xf32, #tpu.memory_space<vmem>>, vector<1x1x4x128xf32>
      %139 = vector.shape_cast %138 : vector<1x1x4x128xf32> to vector<4x128xf32>
      %140 = vector.shape_cast %137 : vector<4x128xf32> to vector<1x1x4x128xf32>
      tpu.vector_store %arg9[%c0_87, %c0_88, %c0_89, %c0_90], %140 {strides = array<i32>} : memref<1x1x4x128xf32, #tpu.memory_space<vmem>>, vector<1x1x4x128xf32>,
    } else {
    }
    %c0 = arith.constant 0 : index
    %c0_1 = arith.constant 0 : index
    %c0_2 = arith.constant 0 : index
    %3 = vector.load %arg5[%c0, %c0_1, %c0_2] : memref<1x1x256xi32, #tpu.memory_space<vmem>>, vector<1x1x256xi32>
    %4 = vector.shape_cast %3 : vector<1x1x256xi32> to vector<1x256xi32>
    %c0_3 = arith.constant 0 : index
    %c0_4 = arith.constant 0 : index
    %c0_5 = arith.constant 0 : index
    %5 = vector.load %arg3[%c0_3, %c0_4, %c0_5] : memref<1x4x256xf32, #tpu.memory_space<vmem>>, vector<1x4x256xf32>
    %6 = vector.shape_cast %5 : vector<1x4x256xf32> to vector<4x256xf32>
    %c0_6 = arith.constant 0 : index
    %c0_7 = arith.constant 0 : index
    %c0_8 = arith.constant 0 : index
    %7 = vector.load %arg4[%c0_6, %c0_7, %c0_8] : memref<1x4x256xf32, #tpu.memory_space<vmem>>, vector<1x4x256xf32>
    %8 = vector.shape_cast %7 : vector<1x4x256xf32> to vector<4x256xf32>
    %c255_i32 = arith.constant 255 : i32
    %9 = vector.broadcast %c255_i32 : i32 to vector<1x256xi32>
    %10 = arith.cmpi ne, %4, %9 : vector<1x256xi32>
    %11 = arith.extui %10 : vector<1x256xi1> to vector<1x256xi32>
    %12 = arith.sitofp %11 : vector<1x256xi32> to vector<1x256xf32>
    %13 = tpu.iota {dimensions = array<i32: 0>} : vector<4x256xi32>
    %14 = vector.broadcast %4 : vector<1x256xi32> to vector<4x256xi32>
    %15 = arith.cmpi eq, %13, %14 : vector<4x256xi32>
    %16 = arith.extui %15 : vector<4x256xi1> to vector<4x256xi32>
    %17 = arith.sitofp %16 : vector<4x256xi32> to vector<4x256xf32>
    %cst = arith.constant dense<0xFF800000> : vector<256xf32>
    %18 = vector.multi_reduction <maximumf>, %6, %cst [0] : vector<4x256xf32> to vector<256xf32>
    %19 = vector.shape_cast %18 : vector<256xf32> to vector<1x256xf32>
    %20 = vector.broadcast %19 : vector<1x256xf32> to vector<4x256xf32>
    %21 = arith.subf %6, %20 : vector<4x256xf32>
    %22 = math.exp %21 : vector<4x256xf32>
    %cst_9 = arith.constant dense<0.000000e+00> : vector<256xf32>
    %23 = vector.multi_reduction <add>, %22, %cst_9 [0] : vector<4x256xf32> to vector<256xf32>
    %24 = vector.shape_cast %23 : vector<256xf32> to vector<1x256xf32>
    %25 = math.log %24 : vector<1x256xf32>
    %26 = arith.mulf %21, %17 : vector<4x256xf32>
    %cst_10 = arith.constant dense<0.000000e+00> : vector<256xf32>
    %27 = vector.multi_reduction <add>, %26, %cst_10 [0] : vector<4x256xf32> to vector<256xf32>
    %28 = vector.shape_cast %27 : vector<256xf32> to vector<1x256xf32>
    %29 = arith.subf %25, %28 : vector<1x256xf32>
    %30 = arith.mulf %29, %12 : vector<1x256xf32>
    %cst_11 = arith.constant 4.000000e+00 : f32
    %31 = vector.broadcast %cst_11 : f32 to vector<1x256xf32>
    %32 = arith.mulf %31, %25 : vector<1x256xf32>
    %cst_12 = arith.constant dense<0.000000e+00> : vector<256xf32>
    %33 = vector.multi_reduction <add>, %21, %cst_12 [0] : vector<4x256xf32> to vector<256xf32>
    %34 = vector.shape_cast %33 : vector<256xf32> to vector<1x256xf32>
    %35 = arith.subf %32, %34 : vector<1x256xf32>
    %36 = arith.mulf %35, %12 : vector<1x256xf32>
    %c0_13 = arith.constant 0 : index
    %c0_14 = arith.constant 0 : index
    %c0_15 = arith.constant 0 : index
    %c0_16 = arith.constant 0 : index
    %37 = vector.load %arg6[%c0_13, %c0_14, %c0_15, %c0_16] : memref<1x1x4x128xf32, #tpu.memory_space<vmem>>, vector<1x1x1x128xf32>
    %38 = vector.shape_cast %37 : vector<1x1x1x128xf32> to vector<1x128xf32>
    %39 = vector.extract_strided_slice %30 {offsets = [0, 0], sizes = [1, 128], strides = [1, 1]} : vector<1x256xf32> to vector<1x128xf32>
    %40 = vector.extract_strided_slice %30 {offsets = [0, 128], sizes = [1, 128], strides = [1, 1]} : vector<1x256xf32> to vector<1x128xf32>
    %41 = arith.addf %39, %40 : vector<1x128xf32>
    %42 = arith.addf %38, %41 : vector<1x128xf32>
    %c0_17 = arith.constant 0 : index
    %c0_18 = arith.constant 0 : index
    %c0_19 = arith.constant 0 : index
    %c0_20 = arith.constant 0 : index
    %43 = vector.load %arg6[%c0_17, %c0_18, %c0_19, %c0_20] : memref<1x1x4x128xf32, #tpu.memory_space<vmem>>, vector<1x1x1x128xf32>
    %44 = vector.shape_cast %43 : vector<1x1x1x128xf32> to vector<1x128xf32>
    %45 = vector.shape_cast %42 : vector<1x128xf32> to vector<1x1x1x128xf32>
    tpu.vector_store %arg6[%c0_17, %c0_18, %c0_19, %c0_20], %45 {strides = array<i32>} : memref<1x1x4x128xf32, #tpu.memory_space<vmem>>, vector<1x1x1x128xf32>,
    %c0_21 = arith.constant 0 : index
    %c0_22 = arith.constant 0 : index
    %c1 = arith.constant 1 : index
    %c0_23 = arith.constant 0 : index
    %46 = vector.load %arg6[%c0_21, %c0_22, %c1, %c0_23] : memref<1x1x4x128xf32, #tpu.memory_space<vmem>>, vector<1x1x1x128xf32>
    %47 = vector.shape_cast %46 : vector<1x1x1x128xf32> to vector<1x128xf32>
    %48 = vector.extract_strided_slice %36 {offsets = [0, 0], sizes = [1, 128], strides = [1, 1]} : vector<1x256xf32> to vector<1x128xf32>
    %49 = vector.extract_strided_slice %36 {offsets = [0, 128], sizes = [1, 128], strides = [1, 1]} : vector<1x256xf32> to vector<1x128xf32>
    %50 = arith.addf %48, %49 : vector<1x128xf32>
    %51 = arith.addf %47, %50 : vector<1x128xf32>
    %c0_24 = arith.constant 0 : index
    %c0_25 = arith.constant 0 : index
    %c1_26 = arith.constant 1 : index
    %c0_27 = arith.constant 0 : index
    %52 = vector.load %arg6[%c0_24, %c0_25, %c1_26, %c0_27] : memref<1x1x4x128xf32, #tpu.memory_space<vmem>>, vector<1x1x1x128xf32>
    %53 = vector.shape_cast %52 : vector<1x1x1x128xf32> to vector<1x128xf32>
    %54 = vector.shape_cast %51 : vector<1x128xf32> to vector<1x1x1x128xf32>
    tpu.vector_store %arg6[%c0_24, %c0_25, %c1_26, %c0_27], %54 {strides = array<i32>} : memref<1x1x4x128xf32, #tpu.memory_space<vmem>>, vector<1x1x1x128xf32>,
    %cst_28 = arith.constant dense<0xFF800000> : vector<256xf32>
    %55 = vector.multi_reduction <maximumf>, %8, %cst_28 [0] : vector<4x256xf32> to vector<256xf32>
    %56 = vector.shape_cast %55 : vector<256xf32> to vector<1x256xf32>
    %57 = vector.broadcast %56 : vector<1x256xf32> to vector<4x256xf32>
    %58 = arith.subf %8, %57 : vector<4x256xf32>
    %59 = math.exp %58 : vector<4x256xf32>
    %cst_29 = arith.constant dense<0.000000e+00> : vector<256xf32>
    %60 = vector.multi_reduction <add>, %59, %cst_29 [0] : vector<4x256xf32> to vector<256xf32>
    %61 = vector.shape_cast %60 : vector<256xf32> to vector<1x256xf32>
    %62 = math.log %61 : vector<1x256xf32>
    %63 = arith.mulf %58, %17 : vector<4x256xf32>
    %cst_30 = arith.constant dense<0.000000e+00> : vector<256xf32>
    %64 = vector.multi_reduction <add>, %63, %cst_30 [0] : vector<4x256xf32> to vector<256xf32>
    %65 = vector.shape_cast %64 : vector<256xf32> to vector<1x256xf32>
    %66 = arith.subf %62, %65 : vector<1x256xf32>
    %67 = arith.mulf %66, %12 : vector<1x256xf32>
    %cst_31 = arith.constant 4.000000e+00 : f32
    %68 = vector.broadcast %cst_31 : f32 to vector<1x256xf32>
    %69 = arith.mulf %68, %62 : vector<1x256xf32>
    %cst_32 = arith.constant dense<0.000000e+00> : vector<256xf32>
    %70 = vector.multi_reduction <add>, %58, %cst_32 [0] : vector<4x256xf32> to vector<256xf32>
    %71 = vector.shape_cast %70 : vector<256xf32> to vector<1x256xf32>
    %72 = arith.subf %69, %71 : vector<1x256xf32>
    %73 = arith.mulf %72, %12 : vector<1x256xf32>
    %c0_33 = arith.constant 0 : index
    %c0_34 = arith.constant 0 : index
    %c2 = arith.constant 2 : index
    %c0_35 = arith.constant 0 : index
    %74 = vector.load %arg6[%c0_33, %c0_34, %c2, %c0_35] : memref<1x1x4x128xf32, #tpu.memory_space<vmem>>, vector<1x1x1x128xf32>
    %75 = vector.shape_cast %74 : vector<1x1x1x128xf32> to vector<1x128xf32>
    %76 = vector.extract_strided_slice %67 {offsets = [0, 0], sizes = [1, 128], strides = [1, 1]} : vector<1x256xf32> to vector<1x128xf32>
    %77 = vector.extract_strided_slice %67 {offsets = [0, 128], sizes = [1, 128], strides = [1, 1]} : vector<1x256xf32> to vector<1x128xf32>
    %78 = arith.addf %76, %77 : vector<1x128xf32>
    %79 = arith.addf %75, %78 : vector<1x128xf32>
    %c0_36 = arith.constant 0 : index
    %c0_37 = arith.constant 0 : index
    %c2_38 = arith.constant 2 : index
    %c0_39 = arith.constant 0 : index
    %80 = vector.load %arg6[%c0_36, %c0_37, %c2_38, %c0_39] : memref<1x1x4x128xf32, #tpu.memory_space<vmem>>, vector<1x1x1x128xf32>
    %81 = vector.shape_cast %80 : vector<1x1x1x128xf32> to vector<1x128xf32>
    %82 = vector.shape_cast %79 : vector<1x128xf32> to vector<1x1x1x128xf32>
    tpu.vector_store %arg6[%c0_36, %c0_37, %c2_38, %c0_39], %82 {strides = array<i32>} : memref<1x1x4x128xf32, #tpu.memory_space<vmem>>, vector<1x1x1x128xf32>,
    %c0_40 = arith.constant 0 : index
    %c0_41 = arith.constant 0 : index
    %c3 = arith.constant 3 : index
    %c0_42 = arith.constant 0 : index
    %83 = vector.load %arg6[%c0_40, %c0_41, %c3, %c0_42] : memref<1x1x4x128xf32, #tpu.memory_space<vmem>>, vector<1x1x1x128xf32>
    %84 = vector.shape_cast %83 : vector<1x1x1x128xf32> to vector<1x128xf32>
    %85 = vector.extract_strided_slice %73 {offsets = [0, 0], sizes = [1, 128], strides = [1, 1]} : vector<1x256xf32> to vector<1x128xf32>
    %86 = vector.extract_strided_slice %73 {offsets = [0, 128], sizes = [1, 128], strides = [1, 1]} : vector<1x256xf32> to vector<1x128xf32>
    %87 = arith.addf %85, %86 : vector<1x128xf32>
    %88 = arith.addf %84, %87 : vector<1x128xf32>
    %c0_43 = arith.constant 0 : index
    %c0_44 = arith.constant 0 : index
    %c3_45 = arith.constant 3 : index
    %c0_46 = arith.constant 0 : index
    %89 = vector.load %arg6[%c0_43, %c0_44, %c3_45, %c0_46] : memref<1x1x4x128xf32, #tpu.memory_space<vmem>>, vector<1x1x1x128xf32>
    %90 = vector.shape_cast %89 : vector<1x1x1x128xf32> to vector<1x128xf32>
    %91 = vector.shape_cast %88 : vector<1x128xf32> to vector<1x1x1x128xf32>
    tpu.vector_store %arg6[%c0_43, %c0_44, %c3_45, %c0_46], %91 {strides = array<i32>} : memref<1x1x4x128xf32, #tpu.memory_space<vmem>>, vector<1x1x1x128xf32>,
    %92 = tpu.reciprocal %24 {approx = true} : vector<1x256xf32> -> vector<1x256xf32>
    %93 = vector.broadcast %92 : vector<1x256xf32> to vector<4x256xf32>
    %94 = arith.mulf %22, %93 : vector<4x256xf32>
    %c0_47 = arith.constant 0 : index
    %c0_48 = arith.constant 0 : index
    %c0_49 = arith.constant 0 : index
    %c0_50 = arith.constant 0 : index
    %95 = vector.load %arg7[%c0_47, %c0_48, %c0_49, %c0_50] : memref<1x1x4x128xf32, #tpu.memory_space<vmem>>, vector<1x1x4x128xf32>
    %96 = vector.shape_cast %95 : vector<1x1x4x128xf32> to vector<4x128xf32>
    %97 = arith.mulf %94, %17 : vector<4x256xf32>
    %98 = vector.extract_strided_slice %97 {offsets = [0, 0], sizes = [4, 128], strides = [1, 1]} : vector<4x256xf32> to vector<4x128xf32>
    %99 = vector.extract_strided_slice %97 {offsets = [0, 128], sizes = [4, 128], strides = [1, 1]} : vector<4x256xf32> to vector<4x128xf32>
    %100 = arith.addf %98, %99 : vector<4x128xf32>
    %101 = arith.addf %96, %100 : vector<4x128xf32>
    %c0_51 = arith.constant 0 : index
    %c0_52 = arith.constant 0 : index
    %c0_53 = arith.constant 0 : index
    %c0_54 = arith.constant 0 : index
    %102 = vector.load %arg7[%c0_51, %c0_52, %c0_53, %c0_54] : memref<1x1x4x128xf32, #tpu.memory_space<vmem>>, vector<1x1x4x128xf32>
    %103 = vector.shape_cast %102 : vector<1x1x4x128xf32> to vector<4x128xf32>
    %104 = vector.shape_cast %101 : vector<4x128xf32> to vector<1x1x4x128xf32>
    tpu.vector_store %arg7[%c0_51, %c0_52, %c0_53, %c0_54], %104 {strides = array<i32>} : memref<1x1x4x128xf32, #tpu.memory_space<vmem>>, vector<1x1x4x128xf32>,
    %c0_55 = arith.constant 0 : index
    %c0_56 = arith.constant 0 : index
    %c0_57 = arith.constant 0 : index
    %c0_58 = arith.constant 0 : index
    %105 = vector.load %arg8[%c0_55, %c0_56, %c0_57, %c0_58] : memref<1x1x4x128xf32, #tpu.memory_space<vmem>>, vector<1x1x4x128xf32>
    %106 = vector.shape_cast %105 : vector<1x1x4x128xf32> to vector<4x128xf32>
    %107 = vector.broadcast %12 : vector<1x256xf32> to vector<4x256xf32>
    %108 = arith.mulf %94, %107 : vector<4x256xf32>
    %109 = vector.extract_strided_slice %108 {offsets = [0, 0], sizes = [4, 128], strides = [1, 1]} : vector<4x256xf32> to vector<4x128xf32>
    %110 = vector.extract_strided_slice %108 {offsets = [0, 128], sizes = [4, 128], strides = [1, 1]} : vector<4x256xf32> to vector<4x128xf32>
    %111 = arith.addf %109, %110 : vector<4x128xf32>
    %112 = arith.addf %106, %111 : vector<4x128xf32>
    %c0_59 = arith.constant 0 : index
    %c0_60 = arith.constant 0 : index
    %c0_61 = arith.constant 0 : index
    %c0_62 = arith.constant 0 : index
    %113 = vector.load %arg8[%c0_59, %c0_60, %c0_61, %c0_62] : memref<1x1x4x128xf32, #tpu.memory_space<vmem>>, vector<1x1x4x128xf32>
    %114 = vector.shape_cast %113 : vector<1x1x4x128xf32> to vector<4x128xf32>
    %115 = vector.shape_cast %112 : vector<4x128xf32> to vector<1x1x4x128xf32>
    tpu.vector_store %arg8[%c0_59, %c0_60, %c0_61, %c0_62], %115 {strides = array<i32>} : memref<1x1x4x128xf32, #tpu.memory_space<vmem>>, vector<1x1x4x128xf32>,
    %c0_63 = arith.constant 0 : index
    %c0_64 = arith.constant 0 : index
    %c0_65 = arith.constant 0 : index
    %c0_66 = arith.constant 0 : index
    %116 = vector.load %arg9[%c0_63, %c0_64, %c0_65, %c0_66] : memref<1x1x4x128xf32, #tpu.memory_space<vmem>>, vector<1x1x4x128xf32>
    %117 = vector.shape_cast %116 : vector<1x1x4x128xf32> to vector<4x128xf32>
    %118 = vector.extract_strided_slice %17 {offsets = [0, 0], sizes = [4, 128], strides = [1, 1]} : vector<4x256xf32> to vector<4x128xf32>
    %119 = vector.extract_strided_slice %17 {offsets = [0, 128], sizes = [4, 128], strides = [1, 1]} : vector<4x256xf32> to vector<4x128xf32>
    %120 = arith.addf %118, %119 : vector<4x128xf32>
    %121 = arith.addf %117, %120 : vector<4x128xf32>
    %c0_67 = arith.constant 0 : index
    %c0_68 = arith.constant 0 : index
    %c0_69 = arith.constant 0 : index
    %c0_70 = arith.constant 0 : index
    %122 = vector.load %arg9[%c0_67, %c0_68, %c0_69, %c0_70] : memref<1x1x4x128xf32, #tpu.memory_space<vmem>>, vector<1x1x4x128xf32>
    %123 = vector.shape_cast %122 : vector<1x1x4x128xf32> to vector<4x128xf32>
    %124 = vector.shape_cast %121 : vector<4x128xf32> to vector<1x1x4x128xf32>
    tpu.vector_store %arg9[%c0_67, %c0_68, %c0_69, %c0_70], %124 {strides = array<i32>} : memref<1x1x4x128xf32, #tpu.memory_space<vmem>>, vector<1x1x4x128xf32>,
    return
  }
  func.func @transform_0(%arg0: i32, %arg1: i32, %arg2: i32) -> (i32, i32, i32) {
    %c1_i32 = arith.constant 1 : i32
    %0 = arith.muli %arg1, %c1_i32 : i32
    %1 = arith.addi %0, %arg2 : i32
    %c0_i32 = arith.constant 0 : i32
    %c0_i32_0 = arith.constant 0 : i32
    return %arg0, %c0_i32, %1 : i32, i32, i32
  }
  func.func @transform_1(%arg0: i32, %arg1: i32, %arg2: i32) -> (i32, i32, i32) {
    %c1_i32 = arith.constant 1 : i32
    %0 = arith.muli %arg1, %c1_i32 : i32
    %1 = arith.addi %0, %arg2 : i32
    %c0_i32 = arith.constant 0 : i32
    %c0_i32_0 = arith.constant 0 : i32
    return %arg0, %c0_i32, %1 : i32, i32, i32
  }
  func.func @transform_2(%arg0: i32, %arg1: i32, %arg2: i32) -> (i32, i32, i32) {
    %c1_i32 = arith.constant 1 : i32
    %0 = arith.muli %arg1, %c1_i32 : i32
    %1 = arith.addi %0, %arg2 : i32
    %c0_i32 = arith.constant 0 : i32
    %c0_i32_0 = arith.constant 0 : i32
    return %arg0, %c0_i32, %1 : i32, i32, i32
  }
  func.func @transform_3(%arg0: i32, %arg1: i32, %arg2: i32) -> (i32, i32, i32, i32) {
    %c0_i32 = arith.constant 0 : i32
    %c0_i32_0 = arith.constant 0 : i32
    %c0_i32_1 = arith.constant 0 : i32
    return %arg0, %arg1, %c0_i32, %c0_i32_0 : i32, i32, i32, i32
  }
  func.func @transform_4(%arg0: i32, %arg1: i32, %arg2: i32) -> (i32, i32, i32, i32) {
    %c0_i32 = arith.constant 0 : i32
    %c0_i32_0 = arith.constant 0 : i32
    %c0_i32_1 = arith.constant 0 : i32
    return %arg0, %arg1, %c0_i32, %c0_i32_0 : i32, i32, i32, i32
  }
  func.func @transform_5(%arg0: i32, %arg1: i32, %arg2: i32) -> (i32, i32, i32, i32) {
    %c0_i32 = arith.constant 0 : i32
    %c0_i32_0 = arith.constant 0 : i32
    %c0_i32_1 = arith.constant 0 : i32
    return %arg0, %arg1, %c0_i32, %c0_i32_0 : i32, i32, i32, i32
  }
  func.func @transform_6(%arg0: i32, %arg1: i32, %arg2: i32) -> (i32, i32, i32, i32) {
    %c0_i32 = arith.constant 0 : i32
    %c0_i32_0 = arith.constant 0 : i32
    %c0_i32_1 = arith.constant 0 : i32
    return %arg0, %arg1, %c0_i32, %c0_i32_0 : i32, i32, i32, i32
  }
}

</mosaic_0001>

<llo_original>
// kernel: _run.1
$region0: #{_run.1}
  #allocation0 [shape = 'u32[]', space=smem, size = 0x4, offset = 0x4, fixed_abs, tag = 'smem constant byte address 0x4 - core index']
  #allocation1 [shape = 'u32[144,128]{1,0:T(1,128)}', space=vmem, size = 0x12000, scoped, tag = 'internal scratch']
  %s0 = inlined_call_operand.hbm [shape: f32[2,4,256], index: 0, kind: input, shape index: {}]
  %s1 = inlined_call_operand.hbm [shape: f32[2,4,256], index: 1, kind: input, shape index: {}]
  %s2 = inlined_call_operand.hbm [shape: s32[2,1,256], index: 2, kind: input, shape index: {}]
  %s3 = inlined_call_operand.hbm [shape: f32[2,1,4,128], index: 3, kind: output, shape index: {0}]
  %s4 = inlined_call_operand.hbm [shape: f32[2,1,4,128], index: 4, kind: output, shape index: {1}]
  %s5 = inlined_call_operand.hbm [shape: f32[2,1,4,128], index: 5, kind: output, shape index: {2}]
  %s6 = inlined_call_operand.hbm [shape: f32[2,1,4,128], index: 6, kind: output, shape index: {3}]
  %7 = xla_tuple %s3, %s4, %s5, %s6
  %s8 = sld [smem:[#allocation0]]
  $region85: #{_run.1} parent=0
    _
  %s10 = ssub.s32 1, %s8
  %s11 = scalar_select 0, %s10, %s8
  $region1: #{_run.1} parent=0
    #allocation2 [shape = 'u8[8192]{0}', space=vmem, size = 0x2000, scoped, tag = 'input window, operand 0']
    #allocation3 [shape = 's32[2]{0}', space=sflag, size = 0x8, scoped, tag = 'scoped memory for _run.1']
    #allocation4 [shape = 's32[2]{0}', space=sflag, size = 0x8, scoped, tag = 'scoped memory for _run.1']
    #allocation5 [shape = 'u8[8192]{0}', space=vmem, size = 0x2000, scoped, tag = 'input window, operand 1']
    #allocation6 [shape = 's32[2]{0}', space=sflag, size = 0x8, scoped, tag = 'scoped memory for _run.1']
    #allocation7 [shape = 'u8[2048]{0}', space=vmem, size = 0x800, scoped, tag = 'input window, operand 2']
    #allocation8 [shape = 'u8[4096]{0}', space=vmem, size = 0x1000, scoped, tag = 'output window, operand 0']
    #allocation9 [shape = 'u8[4096]{0}', space=vmem, size = 0x1000, scoped, tag = 'output window, operand 1']
    #allocation10 [shape = 's32[2]{0}', space=sflag, size = 0x8, scoped, tag = 'scoped memory for _run.1']
    #allocation11 [shape = 'u8[4096]{0}', space=vmem, size = 0x1000, scoped, tag = 'output window, operand 2']
    #allocation12 [shape = 'u8[4096]{0}', space=vmem, size = 0x1000, scoped, tag = 'output window, operand 3']
    #allocation13 [shape = 's32[2]{0}', space=sflag, size = 0x8, scoped, tag = 'scoped memory for _run.1']
    %12 = vsyncpa [#allocation3], 0
    %s13 = scalar_lea.sflag [#allocation3], 1
    %14 = vsyncpa %s13, 0
    %15 = vsyncpa [#allocation6], 0
    %s16 = scalar_lea.sflag [#allocation6], 1
    %17 = vsyncpa %s16, 0
    %18 = vsyncpa [#allocation4], 0
    %s19 = scalar_lea.sflag [#allocation4], 1
    %20 = vsyncpa %s19, 0
    %21 = vsyncpa [#allocation10], 0
    %s22 = scalar_lea.sflag [#allocation10], 1
    %23 = vsyncpa %s22, 0
    %24 = vsyncpa [#allocation13], 0
    %s25 = scalar_lea.sflag [#allocation13], 1
    %26 = vsyncpa %s25, 0
    loop: start=0, step=1, limit=4
    $region2: #{_run.1} parent=1 // loop_pre_header
      _
    $region3: #{_run.1} parent=1 // loop_header
      %s28 = sphi 0, %s32
      %p29 = scmp.ge.s32.totalorder %s28, 4
      %s35 = sphi 0, %s54
      %s36 = sphi 0, %s50
      %s37 = sphi 0, %s46
      %s38 = sphi 0, %s35
      %s39 = sphi 0, %s36
      %s40 = sphi 0, %s37
      %s41 = sphi 0, %s38
      %s42 = sphi 0, %s39
      %s43 = sphi 0, %s40
      %s61 = sphi 0, %s63
      %s64 = sphi 0, %s61
      %s65 = sphi 0, %s64
      %s81 = sphi 0, %s65
      %s91 = sphi 0, %s93
      %s94 = sphi 0, %s91
      %s95 = sphi 0, %s94
      %s111 = sphi 0, %s95
      %s121 = sphi 0, %s123
      %s124 = sphi 0, %s121
      %s125 = sphi 0, %s124
      %s141 = sphi 0, %s125
      %s149 = sphi 0, %s151
      %s152 = sphi 0, %s149
      %s153 = sphi 0, %s152
      %s169 = sphi 0, %s153
      %s177 = sphi 0, %s179
      %s180 = sphi 0, %s177
      %s181 = sphi 0, %s180
      %s197 = sphi 0, %s181
      %s205 = sphi 0, %s207
      %s208 = sphi 0, %s205
      %s209 = sphi 0, %s208
      %s225 = sphi 0, %s209
      %s233 = sphi 0, %s235
      %s236 = sphi 0, %s233
      %s237 = sphi 0, %s236
      %s253 = sphi 0, %s237
    $region4: #{_run.1} parent=1 // loop_header_branch
      %31 = sbr.rel (%p29) target = $region8
    $region5: #{_run.1} parent=1 // loop_body
      %s33 = ssub.s32 %s28, 1
      %s34 = ssub.s32 %s28, 2
      %s44 = sadd.s32 1, %s37
      %p45 = scmp.ge.s32.totalorder %s44, 1
      %s46 = scalar_select %p45, 0, %s44
      %s47 = sadd.s32 1, %s36
      %s48 = scalar_select %p45, %s47, %s36
      %p49 = scmp.ge.s32.totalorder %s48, 1
      %s50 = scalar_select %p49, 0, %s48
      %s51 = sadd.s32 1, %s35
      %s52 = scalar_select %p49, %s51, %s35
      %p53 = scmp.ge.s32.totalorder %s52, 2
      %s54 = scalar_select %p53, 0, %s52
      %s55 = sadd.s32 %s36, %s37
      %s56 = sadd.s32 %s50, %s46
      %s57 = ssub.s32 %s35, %s54
      %s58 = ssub.s32 %s55, %s56
      %s59 = sor.u32 %s57, %s58
      %p60 = scmp.eq.s32.totalorder %s59, 0
      %s62 = sadd.s32 %s61, 1
      %s63 = scalar_select %p60, %s61, %s62
      %p66 = pneg %p60
      %p67 = scmp.eq.s32.totalorder %s28, 1
      %p68 = por %p66, %p67
      %p69 = scmp.ne.s32.totalorder %s61, %s64
      %p70 = scmp.eq.s32.totalorder %s28, 0
      %p71 = por %p69, %p70
      %p72 = scmp.ne.s32.totalorder %s61, %s64
      %p73 = scmp.eq.s32.totalorder %s33, 1
      %p74 = por %p72, %p73
      %p75 = scmp.ne.s32.totalorder %s64, %s65
      %p76 = scmp.eq.s32.totalorder %s33, 0
      %p77 = por %p75, %p76
      %p78 = scmp.ne.s32.totalorder %s64, %s65
      %p79 = scmp.eq.s32.totalorder %s34, 1
      %p80 = por %p78, %p79
      %p82 = scmp.ne.s32.totalorder %s65, %s81
      %p83 = scmp.eq.s32.totalorder %s34, 0
      %p84 = por %p82, %p83
      %s85 = sadd.s32 %s36, %s37
      %s86 = sadd.s32 %s50, %s46
      %s87 = ssub.s32 %s35, %s54
      %s88 = ssub.s32 %s85, %s86
      %s89 = sor.u32 %s87, %s88
      %p90 = scmp.eq.s32.totalorder %s89, 0
      %s92 = sadd.s32 %s91, 1
      %s93 = scalar_select %p90, %s91, %s92
      %p96 = pneg %p90
      %p97 = scmp.eq.s32.totalorder %s28, 1
      %p98 = por %p96, %p97
      %p99 = scmp.ne.s32.totalorder %s91, %s94
      %p100 = scmp.eq.s32.totalorder %s28, 0
      %p101 = por %p99, %p100
      %p102 = scmp.ne.s32.totalorder %s91, %s94
      %p103 = scmp.eq.s32.totalorder %s33, 1
      %p104 = por %p102, %p103
      %p105 = scmp.ne.s32.totalorder %s94, %s95
      %p106 = scmp.eq.s32.totalorder %s33, 0
      %p107 = por %p105, %p106
      %p108 = scmp.ne.s32.totalorder %s94, %s95
      %p109 = scmp.eq.s32.totalorder %s34, 1
      %p110 = por %p108, %p109
      %p112 = scmp.ne.s32.totalorder %s95, %s111
      %p113 = scmp.eq.s32.totalorder %s34, 0
      %p114 = por %p112, %p113
      %s115 = sadd.s32 %s36, %s37
      %s116 = sadd.s32 %s50, %s46
      %s117 = ssub.s32 %s35, %s54
      %s118 = ssub.s32 %s115, %s116
      %s119 = sor.u32 %s117, %s118
      %p120 = scmp.eq.s32.totalorder %s119, 0
      %s122 = sadd.s32 %s121, 1
      %s123 = scalar_select %p120, %s121, %s122
      %p126 = pneg %p120
      %p127 = scmp.eq.s32.totalorder %s28, 1
      %p128 = por %p126, %p127
      %p129 = scmp.ne.s32.totalorder %s121, %s124
      %p130 = scmp.eq.s32.totalorder %s28, 0
      %p131 = por %p129, %p130
      %p132 = scmp.ne.s32.totalorder %s121, %s124
      %p133 = scmp.eq.s32.totalorder %s33, 1
      %p134 = por %p132, %p133
      %p135 = scmp.ne.s32.totalorder %s124, %s125
      %p136 = scmp.eq.s32.totalorder %s33, 0
      %p137 = por %p135, %p136
      %p138 = scmp.ne.s32.totalorder %s124, %s125
      %p139 = scmp.eq.s32.totalorder %s34, 1
      %p140 = por %p138, %p139
      %p142 = scmp.ne.s32.totalorder %s125, %s141
      %p143 = scmp.eq.s32.totalorder %s34, 0
      %p144 = por %p142, %p143
      %s145 = ssub.s32 %s35, %s54
      %s146 = ssub.s32 %s36, %s50
      %s147 = sor.u32 %s145, %s146
      %p148 = scmp.eq.s32.totalorder %s147, 0
      %s150 = sadd.s32 %s149, 1
      %s151 = scalar_select %p148, %s149, %s150
      %p154 = pneg %p148
      %p155 = scmp.eq.s32.totalorder %s28, 1
      %p156 = por %p154, %p155
      %p157 = scmp.ne.s32.totalorder %s149, %s152
      %p158 = scmp.eq.s32.totalorder %s28, 0
      %p159 = por %p157, %p158
      %p160 = scmp.ne.s32.totalorder %s149, %s152
      %p161 = scmp.eq.s32.totalorder %s33, 1
      %p162 = por %p160, %p161
      %p163 = scmp.ne.s32.totalorder %s152, %s153
      %p164 = scmp.eq.s32.totalorder %s33, 0
      %p165 = por %p163, %p164
      %p166 = scmp.ne.s32.totalorder %s152, %s153
      %p167 = scmp.eq.s32.totalorder %s34, 1
      %p168 = por %p166, %p167
      %p170 = scmp.ne.s32.totalorder %s153, %s169
      %p171 = scmp.eq.s32.totalorder %s34, 0
      %p172 = por %p170, %p171
      %s173 = ssub.s32 %s35, %s54
      %s174 = ssub.s32 %s36, %s50
      %s175 = sor.u32 %s173, %s174
      %p176 = scmp.eq.s32.totalorder %s175, 0
      %s178 = sadd.s32 %s177, 1
      %s179 = scalar_select %p176, %s177, %s178
      %p182 = pneg %p176
      %p183 = scmp.eq.s32.totalorder %s28, 1
      %p184 = por %p182, %p183
      %p185 = scmp.ne.s32.totalorder %s177, %s180
      %p186 = scmp.eq.s32.totalorder %s28, 0
      %p187 = por %p185, %p186
      %p188 = scmp.ne.s32.totalorder %s177, %s180
      %p189 = scmp.eq.s32.totalorder %s33, 1
      %p190 = por %p188, %p189
      %p191 = scmp.ne.s32.totalorder %s180, %s181
      %p192 = scmp.eq.s32.totalorder %s33, 0
      %p193 = por %p191, %p192
      %p194 = scmp.ne.s32.totalorder %s180, %s181
      %p195 = scmp.eq.s32.totalorder %s34, 1
      %p196 = por %p194, %p195
      %p198 = scmp.ne.s32.totalorder %s181, %s197
      %p199 = scmp.eq.s32.totalorder %s34, 0
      %p200 = por %p198, %p199
      %s201 = ssub.s32 %s35, %s54
      %s202 = ssub.s32 %s36, %s50
      %s203 = sor.u32 %s201, %s202
      %p204 = scmp.eq.s32.totalorder %s203, 0
      %s206 = sadd.s32 %s205, 1
      %s207 = scalar_select %p204, %s205, %s206
      %p210 = pneg %p204
      %p211 = scmp.eq.s32.totalorder %s28, 1
      %p212 = por %p210, %p211
      %p213 = scmp.ne.s32.totalorder %s205, %s208
      %p214 = scmp.eq.s32.totalorder %s28, 0
      %p215 = por %p213, %p214
      %p216 = scmp.ne.s32.totalorder %s205, %s208
      %p217 = scmp.eq.s32.totalorder %s33, 1
      %p218 = por %p216, %p217
      %p219 = scmp.ne.s32.totalorder %s208, %s209
      %p220 = scmp.eq.s32.totalorder %s33, 0
      %p221 = por %p219, %p220
      %p222 = scmp.ne.s32.totalorder %s208, %s209
      %p223 = scmp.eq.s32.totalorder %s34, 1
      %p224 = por %p222, %p223
      %p226 = scmp.ne.s32.totalorder %s209, %s225
      %p227 = scmp.eq.s32.totalorder %s34, 0
      %p228 = por %p226, %p227
      %s229 = ssub.s32 %s35, %s54
      %s230 = ssub.s32 %s36, %s50
      %s231 = sor.u32 %s229, %s230
      %p232 = scmp.eq.s32.totalorder %s231, 0
      %s234 = sadd.s32 %s233, 1
      %s235 = scalar_select %p232, %s233, %s234
      %p238 = pneg %p232
      %p239 = scmp.eq.s32.totalorder %s28, 1
      %p240 = por %p238, %p239
      %p241 = scmp.ne.s32.totalorder %s233, %s236
      %p242 = scmp.eq.s32.totalorder %s28, 0
      %p243 = por %p241, %p242
      %p244 = scmp.ne.s32.totalorder %s233, %s236
      %p245 = scmp.eq.s32.totalorder %s33, 1
      %p246 = por %p244, %p245
      %p247 = scmp.ne.s32.totalorder %s236, %s237
      %p248 = scmp.eq.s32.totalorder %s33, 0
      %p249 = por %p247, %p248
      %p250 = scmp.ne.s32.totalorder %s236, %s237
      %p251 = scmp.eq.s32.totalorder %s34, 1
      %p252 = por %p250, %p251
      %p254 = scmp.ne.s32.totalorder %s237, %s253
      %p255 = scmp.eq.s32.totalorder %s34, 0
      %p256 = por %p254, %p255
      %p257 = scmp.le.s32.totalorder 1, %s28
      %p258 = scmp.lt.s32.totalorder %s28, 3
      %p259 = pnand %p257, %p258
      %p260 = pneg %p259
      // Predicated region
      $region9: #{_run.1} parent=5 // pred_check
        _
      $region10: #{_run.1} parent=5 // pred_check_branch
        %262 = sbr.rel (%p259) target = $region12
      $region11: #{_run.1} parent=5 // pred_region
        %s263 = ssub.s32 %s28, 1
      $region12: #{_run.1} parent=5 // pred_fallthru
        _
      %p264 = scmp.lt.s32.totalorder %s28, 2
      // Predicated region
      $region13: #{_run.1} parent=5 // pred_check
        %p265 = pneg %p264
      $region14: #{_run.1} parent=5 // pred_check_branch
        %267 = sbr.rel (%p265) target = $region16
      $region15: #{_run.1} parent=5 // pred_region
        // Predicated region
        $region17: #{_run.1} parent=15 // pred_check
          %p268 = pneg %p71
        $region18: #{_run.1} parent=15 // pred_check_branch
          %270 = sbr.rel (%p268) target = $region20
        $region19: #{_run.1} parent=15 // pred_region
          %s271 = sand.u32 %s61, 1
          %s272 = scalar_lea.sflag [#allocation3], %s271
          %s273 = sand.u32 %s61, 1
          %s274 = smul.addr %s273, 8
          %s275 = scalar_lea.vmem [#allocation2], %s274
          %s276 = sadd.s32 %s36, %s37
          %s277 = smul.u32 2, %s276
          %s279 = ssub.s32 128, 128
          %280 = vsyncadd %s272, %s279
          %s281 = smul.addr %s35, 2
          %s282 = sadd.s32 %s277, %s281
          %s283 = smul.addr %s282, 64
          %s284 = scalar_lea.hbm %s0, %s283
          %s286 = sshll.u32 %s275, 4
          %s287 = int_to_ptr.vmem [resolvable:$true] %s286
          %289 = dma.hbm_to_vmem [thread:$0]  %s284, 128, %s287, %s272
        $region20: #{_run.1} parent=15 // pred_fallthru
          _
        // Predicated region
        $region21: #{_run.1} parent=15 // pred_check
          %p290 = pneg %p101
        $region22: #{_run.1} parent=15 // pred_check_branch
          %292 = sbr.rel (%p290) target = $region24
        $region23: #{_run.1} parent=15 // pred_region
          %s293 = sand.u32 %s28, 1
          %s294 = scalar_lea.sflag [#allocation6], %s293
          %s295 = sand.u32 %s91, 1
          %s296 = smul.addr %s295, 8
          %s297 = scalar_lea.vmem [#allocation5], %s296
          %s298 = sadd.s32 %s36, %s37
          %s299 = smul.u32 2, %s298
          %s301 = ssub.s32 128, 128
          %302 = vsyncadd %s294, %s301
          %s303 = smul.addr %s35, 2
          %s304 = sadd.s32 %s299, %s303
          %s305 = smul.addr %s304, 64
          %s306 = scalar_lea.hbm %s1, %s305
          %s308 = sshll.u32 %s297, 4
          %s309 = int_to_ptr.vmem [resolvable:$true] %s308
          %311 = dma.hbm_to_vmem [thread:$0]  %s306, 128, %s309, %s294
        $region24: #{_run.1} parent=15 // pred_fallthru
          _
        // Predicated region
        $region25: #{_run.1} parent=15 // pred_check
          %p312 = pneg %p131
        $region26: #{_run.1} parent=15 // pred_check_branch
          %314 = sbr.rel (%p312) target = $region28
        $region27: #{_run.1} parent=15 // pred_region
          %s315 = sand.u32 %s28, 1
          %s316 = scalar_lea.sflag [#allocation6], %s315
          %s317 = sand.u32 %s121, 1
          %s318 = smul.addr %s317, 2
          %s319 = scalar_lea.vmem [#allocation7], %s318
          %s320 = sadd.s32 %s36, %s37
          %s321 = smul.u32 2, %s320
          %s323 = ssub.s32 32, 32
          %324 = vsyncadd %s316, %s323
          %s325 = smul.addr %s35, 2
          %s326 = sadd.s32 %s321, %s325
          %s327 = smul.addr %s326, 16
          %s328 = scalar_lea.hbm %s2, %s327
          %s330 = sshll.u32 %s319, 4
          %s331 = int_to_ptr.vmem [resolvable:$true] %s330
          %333 = dma.hbm_to_vmem [thread:$0]  %s328, 32, %s331, %s316
        $region28: #{_run.1} parent=15 // pred_fallthru
          _
      $region16: #{_run.1} parent=5 // pred_fallthru
        _
      %p334 = scmp.le.s32.totalorder 1, %s28
      %p335 = scmp.lt.s32.totalorder %s28, 3
      %p336 = pnand %p334, %p335
      %p337 = pneg %p336
      // Predicated region
      $region29: #{_run.1} parent=5 // pred_check
        _
      $region30: #{_run.1} parent=5 // pred_check_branch
        %339 = sbr.rel (%p336) target = $region32
      $region31: #{_run.1} parent=5 // pred_region
        %s340 = ssub.s32 %s28, 1
        %s341 = sand.u32 %s64, 1
        %s342 = scalar_lea.sflag [#allocation3], %s341
        %s343 = sand.u32 %s64, 1
        %s344 = smul.addr %s343, 8
        %s345 = scalar_lea.vmem [#allocation2], %s344
        // Predicated region
        $region33: #{_run.1} parent=31 // pred_check
          %p346 = pneg %p77
        $region34: #{_run.1} parent=31 // pred_check_branch
          %348 = sbr.rel (%p346) target = $region36
        $region35: #{_run.1} parent=31 // pred_region
          %349 = dma.done %s342, 128
        $region36: #{_run.1} parent=31 // pred_fallthru
          _
        %s350 = sand.u32 %s33, 1
        %s351 = scalar_lea.sflag [#allocation6], %s350
        %s352 = sand.u32 %s94, 1
        %s353 = smul.addr %s352, 8
        %s354 = scalar_lea.vmem [#allocation5], %s353
        // Predicated region
        $region37: #{_run.1} parent=31 // pred_check
          %p355 = pneg %p107
        $region38: #{_run.1} parent=31 // pred_check_branch
          %357 = sbr.rel (%p355) target = $region40
        $region39: #{_run.1} parent=31 // pred_region
          %358 = dma.done %s351, 128
        $region40: #{_run.1} parent=31 // pred_fallthru
          _
        %s359 = sand.u32 %s33, 1
        %s360 = scalar_lea.sflag [#allocation6], %s359
        %s361 = sand.u32 %s124, 1
        %s362 = smul.addr %s361, 2
        %s363 = scalar_lea.vmem [#allocation7], %s362
        // Predicated region
        $region41: #{_run.1} parent=31 // pred_check
          %p364 = pneg %p137
        $region42: #{_run.1} parent=31 // pred_check_branch
          %366 = sbr.rel (%p364) target = $region44
        $region43: #{_run.1} parent=31 // pred_region
          %367 = dma.done %s360, 32
        $region44: #{_run.1} parent=31 // pred_fallthru
          _
        %s368 = sand.u32 %s64, 1
        %s369 = scalar_lea.sflag [#allocation3], %s368
        %s370 = sand.u32 %s64, 1
        %s371 = smul.addr %s370, 8
        %s372 = scalar_lea.vmem [#allocation2], %s371
        %p373 = pneg %p77
        %p374 = pneg %p74
        %s375 = sand.u32 %s33, 1
        %s376 = scalar_lea.sflag [#allocation6], %s375
        %s377 = sand.u32 %s94, 1
        %s378 = smul.addr %s377, 8
        %s379 = scalar_lea.vmem [#allocation5], %s378
        %p380 = pneg %p107
        %p381 = pneg %p104
        %s382 = sand.u32 %s33, 1
        %s383 = scalar_lea.sflag [#allocation6], %s382
        %s384 = sand.u32 %s124, 1
        %s385 = smul.addr %s384, 2
        %s386 = scalar_lea.vmem [#allocation7], %s385
        %p387 = pneg %p137
        %p388 = pneg %p134
        %p389 = pneg %p165
        %p390 = pneg %p162
        %s391 = sand.u32 %s152, 1
        %s392 = scalar_lea.sflag [#allocation4], %s391
        %s393 = sand.u32 %s152, 1
        %s394 = smul.addr %s393, 4
        %s395 = scalar_lea.vmem [#allocation8], %s394
        %p396 = pneg %p193
        %p397 = pneg %p190
        %s398 = sand.u32 %s33, 1
        %s399 = scalar_lea.sflag [#allocation10], %s398
        %s400 = sand.u32 %s180, 1
        %s401 = smul.addr %s400, 4
        %s402 = scalar_lea.vmem [#allocation9], %s401
        %p403 = pneg %p221
        %p404 = pneg %p218
        %s405 = sand.u32 %s33, 1
        %s406 = scalar_lea.sflag [#allocation10], %s405
        %s407 = sand.u32 %s208, 1
        %s408 = smul.addr %s407, 4
        %s409 = scalar_lea.vmem [#allocation11], %s408
        %p410 = pneg %p249
        %p411 = pneg %p246
        %s412 = sand.u32 %s236, 1
        %s413 = scalar_lea.sflag [#allocation13], %s412
        %s414 = sand.u32 %s236, 1
        %s415 = smul.addr %s414, 4
        %s416 = scalar_lea.vmem [#allocation12], %s415
        %s417 = sadd.s32 %s39, %s40
        %s418 = smul.u32 2, %s417
        %s419 = sadd.s32 %s39, %s40
        %s420 = smul.u32 2, %s419
        %s421 = sadd.s32 %s39, %s40
        %s422 = smul.u32 2, %s421
        %p423 = scmp.eq.s32.totalorder %s40, 0
        // Predicated region
        $region45: #{_run.1} parent=31 // pred_check
          %p424 = pneg %p423
        $region46: #{_run.1} parent=31 // pred_check_branch
          %426 = sbr.rel (%p424) target = $region48
        $region47: #{_run.1} parent=31 // pred_region
          %427 = vst [vmem:[%s395] sm:$0xf] 0.0
          %428 = vst [vmem:[%s402] sm:$0xf] 0.0
          %429 = vst [vmem:[%s409] sm:$0xf] 0.0
          %430 = vst [vmem:[%s416] sm:$0xf] 0.0
        $region48: #{_run.1} parent=31 // pred_fallthru
          _
        %v431 = vld [vmem:[%s363] sm:$0x3]
        %v432 = vld [vmem:[%s345] sm:$0xff]
        %v433 = vld [vmem:[%s354] sm:$0xff]
        %vm434 = vcmp.ne.s32.totalorder %v431, 255
        %v435 = vsel %vm434, 1, 0
        %v436 = vcvt.s32.f32 %v435
        %v437 = vlaneseq
        %v438 = vshrl.u32 %v437, 7
        %v439 = vlaneseq
        %v440 = vshrl.u32 %v439, 7
        %v441 = vsub.s32 0, %v440
        %v442 = vrot.slane %v431, %v441
        %v443 = vlaneseq
        %v444 = vshrl.u32 %v443, 7
        %v445 = vsub.s32 1, %v444
        %v446 = vrot.slane %v431, %v445
        %vm447 = vcmp.eq.s32.totalorder %v438, %v442
        %vm448 = vcmp.eq.s32.totalorder %v438, %v446
        %v449 = vsel %vm447, 1, 0
        %v450 = vsel %vm448, 1, 0
        %v451 = vcvt.s32.f32 %v449
        %v452 = vcvt.s32.f32 %v450
        %v454 = vcombine.high %v432, %v432
        %vm456 = vcmask 1043456
        %v457 = vsel %vm456, %v432, -inf
        %v458 = vrot.slane %v457, 4
        %v459 = vmax.f32 %v457, %v458
        %v460 = vrot.slane %v459, 2
        %v461 = vmax.f32 %v459, %v460
        %v462 = vrot.slane %v461, 1
        %v463 = vmax.f32 %v461, %v462
        %v464 = vsel %vm456, %v454, -inf
        %v465 = vrot.slane %v464, 4
        %v466 = vmax.f32 %v464, %v465
        %v467 = vrot.slane %v466, 2
        %v468 = vmax.f32 %v466, %v467
        %v469 = vrot.slane %v468, 1
        %v470 = vmax.f32 %v468, %v469
        %v473 = vcombine.low %v463, %v470
        %v475 = vsub.f32 %v432, %v473
        %v476 = vmul.f32 %v475, 1.442695
        %v477 = vpow.pop %v476
        %v479 = vcombine.high %v477, %v477
        %v481 = vsel %vm456, %v477, 0.0
        %v482 = vrot.slane %v481, 4
        %v483 = vadd.f32 %v481, %v482
        %v484 = vrot.slane %v483, 2
        %v485 = vadd.f32 %v483, %v484
        %v486 = vrot.slane %v485, 1
        %v487 = vadd.f32 %v485, %v486
        %v488 = vsel %vm456, %v479, 0.0
        %v489 = vrot.slane %v488, 4
        %v490 = vadd.f32 %v488, %v489
        %v491 = vrot.slane %v490, 2
        %v492 = vadd.f32 %v490, %v491
        %v493 = vrot.slane %v492, 1
        %v494 = vadd.f32 %v492, %v493
        %v495 = vlog2.pop %v487
        %v496 = vmul.f32 %v495, 0.6931472
        %v497 = vlog2.pop %v494
        %v498 = vmul.f32 %v497, 0.6931472
        %v501 = vcombine.low %v451, %v452
        %v503 = vmul.f32 %v475, %v501
        %v505 = vcombine.high %v503, %v503
        %v507 = vsel %vm456, %v503, 0.0
        %v508 = vrot.slane %v507, 4
        %v509 = vadd.f32 %v507, %v508
        %v510 = vrot.slane %v509, 2
        %v511 = vadd.f32 %v509, %v510
        %v512 = vrot.slane %v511, 1
        %v513 = vadd.f32 %v511, %v512
        %v514 = vsel %vm456, %v505, 0.0
        %v515 = vrot.slane %v514, 4
        %v516 = vadd.f32 %v514, %v515
        %v517 = vrot.slane %v516, 2
        %v518 = vadd.f32 %v516, %v517
        %v519 = vrot.slane %v518, 1
        %v520 = vadd.f32 %v518, %v519
        %v521 = vsub.f32 %v496, %v513
        %v522 = vsub.f32 %v498, %v520
        %v524 = vlaneseq
        %v525 = vshrl.u32 %v524, 7
        %v526 = vsub.s32 0, %v525
        %v527 = vrot.slane %v436, %v526
        %v528 = vlaneseq
        %v529 = vshrl.u32 %v528, 7
        %v530 = vsub.s32 1, %v529
        %v531 = vrot.slane %v436, %v530
        %v534 = vmul.f32 %v521, %v527
        %v535 = vmul.f32 %v522, %v531
        %v536 = vmul.f32 %v496, 4.0
        %v537 = vmul.f32 %v498, 4.0
        %v539 = vcombine.high %v475, %v475
        %v541 = vsel %vm456, %v475, 0.0
        %v542 = vrot.slane %v541, 4
        %v543 = vadd.f32 %v541, %v542
        %v544 = vrot.slane %v543, 2
        %v545 = vadd.f32 %v543, %v544
        %v546 = vrot.slane %v545, 1
        %v547 = vadd.f32 %v545, %v546
        %v548 = vsel %vm456, %v539, 0.0
        %v549 = vrot.slane %v548, 4
        %v550 = vadd.f32 %v548, %v549
        %v551 = vrot.slane %v550, 2
        %v552 = vadd.f32 %v550, %v551
        %v553 = vrot.slane %v552, 1
        %v554 = vadd.f32 %v552, %v553
        %v555 = vsub.f32 %v536, %v547
        %v556 = vsub.f32 %v537, %v554
        %v557 = vmul.f32 %v555, %v527
        %v558 = vmul.f32 %v556, %v531
        %v559 = vld [vmem:[%s395] sm:$0x1]
        %v560 = vadd.f32 %v534, %v535
        %v561 = vadd.f32 %v559, %v560
        %562 = vst [vmem:[%s395] sm:$0x1] %v561
        %v563 = vld [vmem:[%s395 + $0x1] sm:$0x1]
        %v564 = vadd.f32 %v557, %v558
        %v565 = vadd.f32 %v563, %v564
        %566 = vst [vmem:[%s395 + $0x1] sm:$0x1] %v565
        %v568 = vcombine.high %v433, %v433
        %v570 = vsel %vm456, %v433, -inf
        %v571 = vrot.slane %v570, 4
        %v572 = vmax.f32 %v570, %v571
        %v573 = vrot.slane %v572, 2
        %v574 = vmax.f32 %v572, %v573
        %v575 = vrot.slane %v574, 1
        %v576 = vmax.f32 %v574, %v575
        %v577 = vsel %vm456, %v568, -inf
        %v578 = vrot.slane %v577, 4
        %v579 = vmax.f32 %v577, %v578
        %v580 = vrot.slane %v579, 2
        %v581 = vmax.f32 %v579, %v580
        %v582 = vrot.slane %v581, 1
        %v583 = vmax.f32 %v581, %v582
        %v586 = vcombine.low %v576, %v583
        %v588 = vsub.f32 %v433, %v586
        %v589 = vmul.f32 %v588, 1.442695
        %v590 = vpow.pop %v589
        %v592 = vcombine.high %v590, %v590
        %v594 = vsel %vm456, %v590, 0.0
        %v595 = vrot.slane %v594, 4
        %v596 = vadd.f32 %v594, %v595
        %v597 = vrot.slane %v596, 2
        %v598 = vadd.f32 %v596, %v597
        %v599 = vrot.slane %v598, 1
        %v600 = vadd.f32 %v598, %v599
        %v601 = vsel %vm456, %v592, 0.0
        %v602 = vrot.slane %v601, 4
        %v603 = vadd.f32 %v601, %v602
        %v604 = vrot.slane %v603, 2
        %v605 = vadd.f32 %v603, %v604
        %v606 = vrot.slane %v605, 1
        %v607 = vadd.f32 %v605, %v606
        %v608 = vlog2.pop %v600
        %v609 = vmul.f32 %v608, 0.6931472
        %v610 = vlog2.pop %v607
        %v611 = vmul.f32 %v610, 0.6931472
        %v612 = vmul.f32 %v588, %v501
        %v614 = vcombine.high %v612, %v612
        %v616 = vsel %vm456, %v612, 0.0
        %v617 = vrot.slane %v616, 4
        %v618 = vadd.f32 %v616, %v617
        %v619 = vrot.slane %v618, 2
        %v620 = vadd.f32 %v618, %v619
        %v621 = vrot.slane %v620, 1
        %v622 = vadd.f32 %v620, %v621
        %v623 = vsel %vm456, %v614, 0.0
        %v624 = vrot.slane %v623, 4
        %v625 = vadd.f32 %v623, %v624
        %v626 = vrot.slane %v625, 2
        %v627 = vadd.f32 %v625, %v626
        %v628 = vrot.slane %v627, 1
        %v629 = vadd.f32 %v627, %v628
        %v630 = vsub.f32 %v609, %v622
        %v631 = vsub.f32 %v611, %v629
        %v632 = vmul.f32 %v630, %v527
        %v633 = vmul.f32 %v631, %v531
        %v634 = vmul.f32 %v609, 4.0
        %v635 = vmul.f32 %v611, 4.0
        %v637 = vcombine.high %v588, %v588
        %v639 = vsel %vm456, %v588, 0.0
        %v640 = vrot.slane %v639, 4
        %v641 = vadd.f32 %v639, %v640
        %v642 = vrot.slane %v641, 2
        %v643 = vadd.f32 %v641, %v642
        %v644 = vrot.slane %v643, 1
        %v645 = vadd.f32 %v643, %v644
        %v646 = vsel %vm456, %v637, 0.0
        %v647 = vrot.slane %v646, 4
        %v648 = vadd.f32 %v646, %v647
        %v649 = vrot.slane %v648, 2
        %v650 = vadd.f32 %v648, %v649
        %v651 = vrot.slane %v650, 1
        %v652 = vadd.f32 %v650, %v651
        %v653 = vsub.f32 %v634, %v645
        %v654 = vsub.f32 %v635, %v652
        %v655 = vmul.f32 %v653, %v527
        %v656 = vmul.f32 %v654, %v531
        %v657 = vld [vmem:[%s395 + $0x2] sm:$0x1]
        %v658 = vadd.f32 %v632, %v633
        %v659 = vadd.f32 %v657, %v658
        %660 = vst [vmem:[%s395 + $0x2] sm:$0x1] %v659
        %v661 = vld [vmem:[%s395 + $0x3] sm:$0x1]
        %v662 = vadd.f32 %v655, %v656
        %v663 = vadd.f32 %v661, %v662
        %664 = vst [vmem:[%s395 + $0x3] sm:$0x1] %v663
        %v665 = vrcp.pop %v487
        %v666 = vrcp.pop %v494
        %v669 = vcombine.low %v665, %v666
        %v671 = vmul.f32 %v477, %v669
        %v672 = vld [vmem:[%s402] sm:$0xf]
        %v673 = vmul.f32 %v671, %v501
        %v675 = vrot.slane %v673, 4
        %v677 = vadd.f32 %v673, %v675
        %v678 = vadd.f32 %v672, %v677
        %679 = vst [vmem:[%s402] sm:$0xf] %v678
        %v680 = vld [vmem:[%s409] sm:$0xf]
        %v681 = vcombine.low %v527, %v531
        %v683 = vmul.f32 %v671, %v681
        %v685 = vrot.slane %v683, 4
        %v687 = vadd.f32 %v683, %v685
        %v688 = vadd.f32 %v680, %v687
        %689 = vst [vmem:[%s409] sm:$0xf] %v688
        %v690 = vld [vmem:[%s416] sm:$0xf]
        %v691 = vadd.f32 %v451, %v452
        %v692 = vadd.f32 %v690, %v691
        %693 = vst [vmem:[%s416] sm:$0xf] %v692
        %s694 = sand.u32 %s152, 1
        %s695 = scalar_lea.sflag [#allocation4], %s694
        %s696 = sand.u32 %s152, 1
        %s697 = smul.addr %s696, 4
        %s698 = scalar_lea.vmem [#allocation8], %s697
        %s699 = sand.u32 %s33, 1
        %s700 = scalar_lea.sflag [#allocation10], %s699
        %s701 = sand.u32 %s180, 1
        %s702 = smul.addr %s701, 4
        %s703 = scalar_lea.vmem [#allocation9], %s702
        %s704 = sand.u32 %s33, 1
        %s705 = scalar_lea.sflag [#allocation10], %s704
        %s706 = sand.u32 %s208, 1
        %s707 = smul.addr %s706, 4
        %s708 = scalar_lea.vmem [#allocation11], %s707
        %s709 = sand.u32 %s236, 1
        %s710 = scalar_lea.sflag [#allocation13], %s709
        %s711 = sand.u32 %s236, 1
        %s712 = smul.addr %s711, 4
        %s713 = scalar_lea.vmem [#allocation12], %s712
        // Predicated region
        $region49: #{_run.1} parent=31 // pred_check
          %p714 = pneg %p162
        $region50: #{_run.1} parent=31 // pred_check_branch
          %716 = sbr.rel (%p714) target = $region52
        $region51: #{_run.1} parent=31 // pred_region
          %s718 = ssub.s32 64, 64
          %719 = vsyncadd %s695, %s718
          %s720 = sadd.s32 %s39, %s38
          %s721 = smul.addr %s720, 64
          %s722 = scalar_lea.hbm %s3, %s721
          %s724 = sshll.u32 %s698, 4
          %s725 = int_to_ptr.vmem [resolvable:$true] %s724
          %727 = dma.vmem_to_hbm [thread:$0]  %s725, 64, %s722, %s695
        $region52: #{_run.1} parent=31 // pred_fallthru
          _
        // Predicated region
        $region53: #{_run.1} parent=31 // pred_check
          %p728 = pneg %p190
        $region54: #{_run.1} parent=31 // pred_check_branch
          %730 = sbr.rel (%p728) target = $region56
        $region55: #{_run.1} parent=31 // pred_region
          %s732 = ssub.s32 64, 64
          %733 = vsyncadd %s700, %s732
          %s734 = sadd.s32 %s39, %s38
          %s735 = smul.addr %s734, 64
          %s736 = scalar_lea.hbm %s4, %s735
          %s738 = sshll.u32 %s703, 4
          %s739 = int_to_ptr.vmem [resolvable:$true] %s738
          %741 = dma.vmem_to_hbm [thread:$0]  %s739, 64, %s736, %s700
        $region56: #{_run.1} parent=31 // pred_fallthru
          _
        // Predicated region
        $region57: #{_run.1} parent=31 // pred_check
          %p742 = pneg %p218
        $region58: #{_run.1} parent=31 // pred_check_branch
          %744 = sbr.rel (%p742) target = $region60
        $region59: #{_run.1} parent=31 // pred_region
          %s746 = ssub.s32 64, 64
          %747 = vsyncadd %s705, %s746
          %s748 = sadd.s32 %s39, %s38
          %s749 = smul.addr %s748, 64
          %s750 = scalar_lea.hbm %s5, %s749
          %s752 = sshll.u32 %s708, 4
          %s753 = int_to_ptr.vmem [resolvable:$true] %s752
          %755 = dma.vmem_to_hbm [thread:$0]  %s753, 64, %s750, %s705
        $region60: #{_run.1} parent=31 // pred_fallthru
          _
        // Predicated region
        $region61: #{_run.1} parent=31 // pred_check
          %p756 = pneg %p246
        $region62: #{_run.1} parent=31 // pred_check_branch
          %758 = sbr.rel (%p756) target = $region64
        $region63: #{_run.1} parent=31 // pred_region
          %s760 = ssub.s32 64, 64
          %761 = vsyncadd %s710, %s760
          %s762 = sadd.s32 %s39, %s38
          %s763 = smul.addr %s762, 64
          %s764 = scalar_lea.hbm %s6, %s763
          %s766 = sshll.u32 %s713, 4
          %s767 = int_to_ptr.vmem [resolvable:$true] %s766
          %769 = dma.vmem_to_hbm [thread:$0]  %s767, 64, %s764, %s710
        $region64: #{_run.1} parent=31 // pred_fallthru
          _
      $region32: #{_run.1} parent=5 // pred_fallthru
        _
      %p770 = scmp.le.s32.totalorder 2, %s28
      // Predicated region
      $region65: #{_run.1} parent=5 // pred_check
        %p771 = pneg %p770
      $region66: #{_run.1} parent=5 // pred_check_branch
        %773 = sbr.rel (%p771) target = $region68
      $region67: #{_run.1} parent=5 // pred_region
        %s774 = ssub.s32 %s28, 2
        // Predicated region
        $region69: #{_run.1} parent=67 // pred_check
          %p775 = pneg %p168
        $region70: #{_run.1} parent=67 // pred_check_branch
          %777 = sbr.rel (%p775) target = $region72
        $region71: #{_run.1} parent=67 // pred_region
          %s778 = sand.u32 %s153, 1
          %s779 = scalar_lea.sflag [#allocation4], %s778
          %s780 = sand.u32 %s153, 1
          %s781 = smul.addr %s780, 4
          %s782 = scalar_lea.vmem [#allocation8], %s781
          %783 = dma.done %s779, 64
        $region72: #{_run.1} parent=67 // pred_fallthru
          _
        // Predicated region
        $region73: #{_run.1} parent=67 // pred_check
          %p784 = pneg %p196
        $region74: #{_run.1} parent=67 // pred_check_branch
          %786 = sbr.rel (%p784) target = $region76
        $region75: #{_run.1} parent=67 // pred_region
          %s787 = sand.u32 %s34, 1
          %s788 = scalar_lea.sflag [#allocation10], %s787
          %s789 = sand.u32 %s181, 1
          %s790 = smul.addr %s789, 4
          %s791 = scalar_lea.vmem [#allocation9], %s790
          %792 = dma.done %s788, 64
        $region76: #{_run.1} parent=67 // pred_fallthru
          _
        // Predicated region
        $region77: #{_run.1} parent=67 // pred_check
          %p793 = pneg %p224
        $region78: #{_run.1} parent=67 // pred_check_branch
          %795 = sbr.rel (%p793) target = $region80
        $region79: #{_run.1} parent=67 // pred_region
          %s796 = sand.u32 %s34, 1
          %s797 = scalar_lea.sflag [#allocation10], %s796
          %s798 = sand.u32 %s209, 1
          %s799 = smul.addr %s798, 4
          %s800 = scalar_lea.vmem [#allocation11], %s799
          %801 = dma.done %s797, 64
        $region80: #{_run.1} parent=67 // pred_fallthru
          _
        // Predicated region
        $region81: #{_run.1} parent=67 // pred_check
          %p802 = pneg %p252
        $region82: #{_run.1} parent=67 // pred_check_branch
          %804 = sbr.rel (%p802) target = $region84
        $region83: #{_run.1} parent=67 // pred_region
          %s805 = sand.u32 %s237, 1
          %s806 = scalar_lea.sflag [#allocation13], %s805
          %s807 = sand.u32 %s237, 1
          %s808 = smul.addr %s807, 4
          %s809 = scalar_lea.vmem [#allocation12], %s808
          %810 = dma.done %s806, 64
        $region84: #{_run.1} parent=67 // pred_fallthru
          _
      $region68: #{_run.1} parent=5 // pred_fallthru
        _
    $region6: #{_run.1} parent=1 // loop_footer
      %s32 = sadd.s32 1, %s28
    $region7: #{_run.1} parent=1 // loop_footer_branch
      %27 = sbr.rel target = $region3
    $region8: #{_run.1} parent=1 // loop_exit
      _
    %811 = vsyncpa [#allocation3], 1
    %s812 = scalar_lea.sflag [#allocation3], 1
    %813 = vsyncpa %s812, 1
    %814 = vsyncpa [#allocation6], 1
    %s815 = scalar_lea.sflag [#allocation6], 1
    %816 = vsyncpa %s815, 1
    %817 = vsyncpa [#allocation4], 1
    %s818 = scalar_lea.sflag [#allocation4], 1
    %819 = vsyncpa %s818, 1
    %820 = vsyncpa [#allocation10], 1
    %s821 = scalar_lea.sflag [#allocation10], 1
    %822 = vsyncpa %s821, 1
    %823 = vsyncpa [#allocation13], 1
    %s824 = scalar_lea.sflag [#allocation13], 1
    %825 = vsyncpa %s824, 1

</llo_original>
